<compile_context>
chip_gen: v6e
topology: v6e:2x2x1
jax: 0.10.0
libtpu: 0.0.40
codegen_flags: <defaults>
</compile_context>

<pallas_src>
import functools

import jax
import jax.numpy as jnp
from jax.experimental import pallas as pl
from jax.experimental.pallas import tpu as pltpu

LN_EPS = 1e-5


def _round_up(x, m):
    return ((x + m - 1) // m) * m


def _vmem_capacity_bytes():
    """Per-core VMEM capacity; conservative 64 MiB (v7x per-TC) fallback."""
    try:
        info = pltpu.get_tpu_info()
        cap = getattr(info, "vmem_capacity_bytes", None)
        if cap:
            return int(cap)
    except Exception:
        pass
    return 64 << 20


def _layernorm_affine(y, gamma, beta, d_out):
    """LayerNorm over the real d_out features of a lane-padded f32 tile.

    Padded lanes (>= d_out) of `y` are exactly zero (w2 columns and b2 are
    zero-padded), so unmasked lane reductions scaled by 1/d_out give the exact
    statistics -- no lane mask / extra VPU passes needed.  var is computed as
    E[y^2] - mean^2 so the two XLU reductions are independent.
    NOTE: garbage rows of a partial last row-tile may produce non-finite
    values here; those rows are never written back (partial-block writeback).
    """
    inv_d = 1.0 / d_out
    s1 = jnp.sum(y, axis=-1, keepdims=True)
    s2 = jnp.sum(y * y, axis=-1, keepdims=True)
    mean = s1 * inv_d
    var = jnp.maximum(s2 * inv_d - mean * mean, 0.0)
    y_n = (y - mean) * jax.lax.rsqrt(var + LN_EPS)
    return y_n * gamma + beta


def _ffn_resident_kernel(x_ref, w1_ref, b1_ref, w2_ref, b2_ref, g_ref,
                         beta_ref, o_ref, *, d_out, mat_dtype):
    """One row-tile, weights fully resident in VMEM."""
    x = x_ref[...].astype(mat_dtype)                       # in-kernel cast
    h = jnp.dot(x, w1_ref[...], preferred_element_type=jnp.float32)
    h = jnp.maximum(h + b1_ref[...], 0.0)
    # Dropout: module evaluated in inference mode -> identity.
    y = jnp.dot(h.astype(mat_dtype), w2_ref[...],
                preferred_element_type=jnp.float32)
    y = y + b2_ref[...]
    o_ref[...] = _layernorm_affine(y, g_ref[...], beta_ref[...],
                                   d_out).astype(o_ref.dtype)


def _ffn_htiled_kernel(x_ref, w1_ref, b1_ref, w2_ref, b2_ref, g_ref, beta_ref,
                       o_ref, acc_ref, *, d_out, mat_dtype):
    """One (row-tile, H-tile) step; H is a reduction grid axis."""
    k = pl.program_id(1)

    @pl.when(k == 0)
    def _():
        acc_ref[...] = jnp.zeros_like(acc_ref)

    x = x_ref[...].astype(mat_dtype)
    h = jnp.dot(x, w1_ref[...], preferred_element_type=jnp.float32)
    h = jnp.maximum(h + b1_ref[...], 0.0)
    # Dropout: inference mode -> identity.
    acc_ref[...] += jnp.dot(h.astype(mat_dtype), w2_ref[...],
                            preferred_element_type=jnp.float32)

    @pl.when(k == pl.num_programs(1) - 1)
    def _():
        y = acc_ref[...] + b2_ref[...]
        o_ref[...] = _layernorm_affine(y, g_ref[...], beta_ref[...],
                                       d_out).astype(o_ref.dtype)


def ffn_pallas(x, w1, b1, w2, b2, gamma, beta, *, row_tile=None,
               h_tile_cap=2048, use_bf16=True, force_h_tiling=False):
    """x: [N, D_in]; w1: [D_in, H]; b1: [1, H]; w2: [H, D_out];
    b2/gamma/beta: [1, D_out].  Weights are pre-transposed vs. PyTorch.
    Returns [N, D_out] in x.dtype."""
    n, d_in = x.shape
    h = w1.shape[1]
    d_out = w2.shape[1]
    out_dtype = x.dtype

    mat_dtype = jnp.bfloat16 if use_bf16 else jnp.float32
    w_bpe = jnp.dtype(mat_dtype).itemsize
    x_bpe = jnp.dtype(x.dtype).itemsize
    out_bpe = jnp.dtype(out_dtype).itemsize

    # Lane-align (128) feature dims.  H is only rounded to 128 (never to a
    # chunk multiple) so no MXU cycles / DMA are wasted on zero columns.
    d_in_p = _round_up(d_in, 128)
    d_out_p = _round_up(d_out, 128)
    h_p = _round_up(h, 128)

    def pad2(a, rows, cols, dtype):
        a = a.astype(dtype)
        return jnp.pad(a, ((0, rows - a.shape[0]), (0, cols - a.shape[1])))

    # x stays in its original dtype (bf16 cast happens in-kernel); pad its
    # feature dim only when it is not already lane-aligned.
    x_p = x if d_in == d_in_p else jnp.pad(x, ((0, 0), (0, d_in_p - d_in)))
    w1_p = pad2(w1, d_in_p, h_p, mat_dtype)
    w2_p = pad2(w2, h_p, d_out_p, mat_dtype)
    b1_p = pad2(b1, 1, h_p, jnp.float32)
    b2_p = pad2(b2, 1, d_out_p, jnp.float32)
    g_p = pad2(gamma, 1, d_out_p, jnp.float32)
    beta_p = pad2(beta, 1, d_out_p, jnp.float32)

    vmem_cap = _vmem_capacity_bytes()
    vmem_budget = int(0.85 * vmem_cap)

    # Row tile: large and MXU-aligned; on 64-MiB (v7x-class) parts also make
    # sure the "parallel" rows axis has >=2 steps so both TCs get work.
    if row_tile is None:
        row_tile = 512 if vmem_cap >= (96 << 20) else 256
    if vmem_cap < (96 << 20):
        row_tile = min(row_tile, max(128, _round_up(pl.cdiv(n, 2), 128)))
    else:
        row_tile = min(row_tile, max(256, _round_up(pl.cdiv(n, 2), 256)))
    row_tile = max(8, min(row_tile, _round_up(n, 8)))
    n_row_tiles = pl.cdiv(n, row_tile)

    weight_bytes = (d_in_p * h_p + h_p * d_out_p) * w_bpe
    fixed_bytes = ((h_p + 3 * d_out_p) * 4                 # biases / ln params
                   + 2 * row_tile * d_in_p * x_bpe         # x tile (2 bufs)
                   + 2 * row_tile * d_out_p * out_bpe      # out tile (2 bufs)
                   + row_tile * d_out_p * 4                # y / acc (f32)
                   + (4 << 20))                            # headroom
    resident_bytes = weight_bytes + row_tile * h_p * 4 + fixed_bytes
    use_resident = (not force_h_tiling) and resident_bytes <= vmem_budget

    flops = 2 * n * (d_in_p * h_p + h_p * d_out_p)
    bytes_accessed = int(x_p.size * x_bpe + weight_bytes
                         + (h_p + 3 * d_out_p) * 4 + n * d_out_p * out_bpe)
    cost = pl.CostEstimate(flops=flops, transcendentals=n,
                           bytes_accessed=bytes_accessed)

    resident_spec = dict(pipeline_mode=pl.Buffered(1))     # grid-invariant

    if use_resident:
        kernel = functools.partial(_ffn_resident_kernel, d_out=d_out,
                                   mat_dtype=mat_dtype)
        vmem_limit = int(min(max(resident_bytes, 16 << 20), vmem_budget))
        out_p = pl.pallas_call(
            kernel,
            out_shape=jax.ShapeDtypeStruct((n, d_out_p), out_dtype),
            grid=(n_row_tiles,),
            in_specs=[
                pl.BlockSpec((row_tile, d_in_p), lambda i: (i, 0)),          # x
                pl.BlockSpec((d_in_p, h_p), lambda i: (0, 0), **resident_spec),
                pl.BlockSpec((1, h_p), lambda i: (0, 0), **resident_spec),
                pl.BlockSpec((h_p, d_out_p), lambda i: (0, 0), **resident_spec),
                pl.BlockSpec((1, d_out_p), lambda i: (0, 0), **resident_spec),
                pl.BlockSpec((1, d_out_p), lambda i: (0, 0), **resident_spec),
                pl.BlockSpec((1, d_out_p), lambda i: (0, 0), **resident_spec),
            ],
            out_specs=pl.BlockSpec((row_tile, d_out_p), lambda i: (i, 0)),
            compiler_params=pltpu.CompilerParams(
                dimension_semantics=("parallel",),
                vmem_limit_bytes=vmem_limit),
            cost_estimate=cost,
        )(x_p, w1_p, b1_p, w2_p, b2_p, g_p, beta_p)
    else:
        # Weights do not fit: tile H on a second (reduction) grid axis.
        def tiled_bytes(ht):
            return (2 * (d_in_p * ht + ht * d_out_p) * w_bpe  # w tiles (2 bufs)
                    + 2 * ht * 4                              # b1 tile (2 bufs)
                    + row_tile * ht * 4                       # h intermediate
                    + fixed_bytes)

        h_tile = 128
        cap = max(128, min(h_p, _round_up(h_tile_cap, 128)))
        for ht in range(cap, 127, -128):
            if h_p % ht == 0 and tiled_bytes(ht) <= vmem_budget:
                h_tile = ht
                break
        n_h_tiles = h_p // h_tile

        kernel = functools.partial(_ffn_htiled_kernel, d_out=d_out,
                                   mat_dtype=mat_dtype)
        vmem_limit = int(min(max(tiled_bytes(h_tile), 16 << 20), vmem_budget))
        out_p = pl.pallas_call(
            kernel,
            out_shape=jax.ShapeDtypeStruct((n, d_out_p), out_dtype),
            grid=(n_row_tiles, n_h_tiles),
            in_specs=[
                pl.BlockSpec((row_tile, d_in_p), lambda i, k: (i, 0)),       # x
                pl.BlockSpec((d_in_p, h_tile), lambda i, k: (0, k)),         # w1
                pl.BlockSpec((1, h_tile), lambda i, k: (0, k)),              # b1
                pl.BlockSpec((h_tile, d_out_p), lambda i, k: (k, 0)),        # w2
                pl.BlockSpec((1, d_out_p), lambda i, k: (0, 0), **resident_spec),
                pl.BlockSpec((1, d_out_p), lambda i, k: (0, 0), **resident_spec),
                pl.BlockSpec((1, d_out_p), lambda i, k: (0, 0), **resident_spec),
            ],
            out_specs=pl.BlockSpec((row_tile, d_out_p), lambda i, k: (i, 0)),
            scratch_shapes=[pltpu.VMEM((row_tile, d_out_p), jnp.float32)],
            compiler_params=pltpu.CompilerParams(
                dimension_semantics=("parallel", "arbitrary"),
                vmem_limit_bytes=vmem_limit),
            cost_estimate=cost,
        )(x_p, w1_p, b1_p, w2_p, b2_p, g_p, beta_p)

    # Strip feature padding (layout plumbing only; no extra in-kernel compute).
    return out_p[:, :d_out]


def ffn_reference(x, w1, b1, w2, b2, gamma, beta):
    h = jnp.maximum(x @ w1 + b1, 0.0)
    y = h @ w2 + b2
    mean = jnp.mean(y, axis=-1, keepdims=True)
    var = jnp.mean((y - mean) ** 2, axis=-1, keepdims=True)
    return (y - mean) * jax.lax.rsqrt(var + 1e-5) * gamma + beta


if __name__ == "__main__":
    # Small shapes consistent with the module's forward:
    # batch=2, seq=8, input_dim=16, hidden_dim=32, output_dim=16
    batch, seq = 2, 8
    input_dim, hidden_dim, output_dim = 16, 32, 16

    key = jax.random.PRNGKey(0)
    k_x, k_w1, k_b1, k_w2, k_b2, k_w1b, k_w2b = jax.random.split(key, 7)

    x = jax.random.normal(k_x, (batch, seq, input_dim), dtype=jnp.float32)

    # Deterministic parameter init (weights stored transposed vs. PyTorch).
    w1 = jax.random.normal(k_w1, (input_dim, hidden_dim), jnp.float32) * 0.1
    b1 = jax.random.normal(k_b1, (1, hidden_dim), jnp.float32) * 0.1
    w2 = jax.random.normal(k_w2, (hidden_dim, output_dim), jnp.float32) * 0.1
    b2 = jax.random.normal(k_b2, (1, output_dim), jnp.float32) * 0.1
    gamma = jnp.ones((1, output_dim), jnp.float32)
    beta = jnp.zeros((1, output_dim), jnp.float32)

    # Flatten (batch, seq) -> rows; the hot path runs in the Pallas kernel.
    x2d = x.reshape(batch * seq, input_dim)
    out2d = ffn_pallas(x2d, w1, b1, w2, b2, gamma, beta)
    out = out2d.reshape(batch, seq, output_dim)
    jax.block_until_ready(out)

    # Check vs. a pure-JAX f32 reference (tolerance loosened for bf16 matmuls).
    ref = ffn_reference(x2d, w1, b1, w2, b2, gamma, beta).reshape(
        batch, seq, output_dim)
    assert jnp.allclose(out, ref, atol=5e-2, rtol=5e-2), "mismatch (resident)"

    # Also exercise the H-grid-tiled (accumulator) path with a forced small
    # h_tile so both code paths are compile/run/correctness checked.
    hidden_b = 256
    w1b = jax.random.normal(k_w1b, (input_dim, hidden_b), jnp.float32) * 0.1
    b1b = jnp.zeros((1, hidden_b), jnp.float32)
    w2b = jax.random.normal(k_w2b, (hidden_b, output_dim), jnp.float32) * 0.1
    out_t = ffn_pallas(x2d, w1b, b1b, w2b, b2, gamma, beta,
                       force_h_tiling=True, h_tile_cap=128)
    jax.block_until_ready(out_t)
    ref_t = ffn_reference(x2d, w1b, b1b, w2b, b2, gamma, beta)
    assert jnp.allclose(out_t, ref_t, atol=5e-2, rtol=5e-2), "mismatch (tiled)"

    print("KERNEL_OK")
</pallas_src>

<mosaic_0001>
module attributes {stable_mosaic.version = 11 : i64} {
  func.func @_ffn_resident_kernel(%arg0: i32, %arg1: memref<16x128xf32, #tpu.memory_space<vmem>>, %arg2: memref<128x128xbf16, #tpu.memory_space<vmem>>, %arg3: memref<1x128xf32, #tpu.memory_space<vmem>>, %arg4: memref<128x128xbf16, #tpu.memory_space<vmem>>, %arg5: memref<1x128xf32, #tpu.memory_space<vmem>>, %arg6: memref<1x128xf32, #tpu.memory_space<vmem>>, %arg7: memref<1x128xf32, #tpu.memory_space<vmem>>, %arg8: memref<16x128xf32, #tpu.memory_space<vmem>>) attributes {dimension_semantics = [#tpu.dimension_semantics<parallel>], iteration_bounds = array<i64: 1>, scalar_prefetch = 0 : i64, scratch_operands = 0 : i64, tpu.core_type = #tpu.core_type<tc>, window_params = [{transform_indices = @transform_0, window_bounds = array<i64: 16, 128>}, {pipeline_mode = #tpu.pipeline_mode<synchronous>, transform_indices = @transform_1, window_bounds = array<i64: 128, 128>}, {pipeline_mode = #tpu.pipeline_mode<synchronous>, transform_indices = @transform_2, window_bounds = array<i64: 1, 128>}, {pipeline_mode = #tpu.pipeline_mode<synchronous>, transform_indices = @transform_3, window_bounds = array<i64: 128, 128>}, {pipeline_mode = #tpu.pipeline_mode<synchronous>, transform_indices = @transform_4, window_bounds = array<i64: 1, 128>}, {pipeline_mode = #tpu.pipeline_mode<synchronous>, transform_indices = @transform_5, window_bounds = array<i64: 1, 128>}, {pipeline_mode = #tpu.pipeline_mode<synchronous>, transform_indices = @transform_6, window_bounds = array<i64: 1, 128>}, {transform_indices = @transform_7, window_bounds = array<i64: 16, 128>}]} {
    %c0 = arith.constant 0 : index
    %c0_0 = arith.constant 0 : index
    %0 = vector.load %arg1[%c0, %c0_0] : memref<16x128xf32, #tpu.memory_space<vmem>>, vector<16x128xf32>
    %1 = arith.truncf %0 : vector<16x128xf32> to vector<16x128xbf16>
    %c0_1 = arith.constant 0 : index
    %c0_2 = arith.constant 0 : index
    %2 = vector.load %arg2[%c0_1, %c0_2] : memref<128x128xbf16, #tpu.memory_space<vmem>>, vector<128x128xbf16>
    %cst = arith.constant dense<0.000000e+00> : vector<16x128xf32>
    %3 = tpu.matmul %1, %2, %cst {dimension_numbers = #tpu.dot_dimension_numbers<[1], [0], [0], [1], [0, 0, 1, 1], [], []>} : vector<16x128xbf16>, vector<128x128xbf16>, vector<16x128xf32> -> vector<16x128xf32>
    %c0_3 = arith.constant 0 : index
    %c0_4 = arith.constant 0 : index
    %4 = vector.load %arg3[%c0_3, %c0_4] : memref<1x128xf32, #tpu.memory_space<vmem>>, vector<1x128xf32>
    %5 = vector.broadcast %4 : vector<1x128xf32> to vector<16x128xf32>
    %6 = arith.addf %3, %5 : vector<16x128xf32>
    %cst_5 = arith.constant 0.000000e+00 : f32
    %7 = vector.broadcast %cst_5 : f32 to vector<16x128xf32>
    %8 = arith.maximumf %6, %7 : vector<16x128xf32>
    %9 = arith.truncf %8 : vector<16x128xf32> to vector<16x128xbf16>
    %c0_6 = arith.constant 0 : index
    %c0_7 = arith.constant 0 : index
    %10 = vector.load %arg4[%c0_6, %c0_7] : memref<128x128xbf16, #tpu.memory_space<vmem>>, vector<128x128xbf16>
    %cst_8 = arith.constant dense<0.000000e+00> : vector<16x128xf32>
    %11 = tpu.matmul %9, %10, %cst_8 {dimension_numbers = #tpu.dot_dimension_numbers<[1], [0], [0], [1], [0, 0, 1, 1], [], []>} : vector<16x128xbf16>, vector<128x128xbf16>, vector<16x128xf32> -> vector<16x128xf32>
    %c0_9 = arith.constant 0 : index
    %c0_10 = arith.constant 0 : index
    %12 = vector.load %arg5[%c0_9, %c0_10] : memref<1x128xf32, #tpu.memory_space<vmem>>, vector<1x128xf32>
    %13 = vector.broadcast %12 : vector<1x128xf32> to vector<16x128xf32>
    %14 = arith.addf %11, %13 : vector<16x128xf32>
    %c0_11 = arith.constant 0 : index
    %c0_12 = arith.constant 0 : index
    %15 = vector.load %arg6[%c0_11, %c0_12] : memref<1x128xf32, #tpu.memory_space<vmem>>, vector<1x128xf32>
    %c0_13 = arith.constant 0 : index
    %c0_14 = arith.constant 0 : index
    %16 = vector.load %arg7[%c0_13, %c0_14] : memref<1x128xf32, #tpu.memory_space<vmem>>, vector<1x128xf32>
    %cst_15 = arith.constant dense<0.000000e+00> : vector<16xf32>
    %17 = vector.multi_reduction <add>, %14, %cst_15 [1] : vector<16x128xf32> to vector<16xf32>
    %18 = vector.shape_cast %17 : vector<16xf32> to vector<16x1xf32>
    %19 = arith.mulf %14, %14 : vector<16x128xf32>
    %cst_16 = arith.constant dense<0.000000e+00> : vector<16xf32>
    %20 = vector.multi_reduction <add>, %19, %cst_16 [1] : vector<16x128xf32> to vector<16xf32>
    %21 = vector.shape_cast %20 : vector<16xf32> to vector<16x1xf32>
    %cst_17 = arith.constant 6.250000e-02 : f32
    %22 = vector.broadcast %cst_17 : f32 to vector<16x1xf32>
    %23 = arith.mulf %18, %22 : vector<16x1xf32>
    %cst_18 = arith.constant 6.250000e-02 : f32
    %24 = vector.broadcast %cst_18 : f32 to vector<16x1xf32>
    %25 = arith.mulf %21, %24 : vector<16x1xf32>
    %26 = arith.mulf %23, %23 : vector<16x1xf32>
    %27 = arith.subf %25, %26 : vector<16x1xf32>
    %cst_19 = arith.constant 0.000000e+00 : f32
    %28 = vector.broadcast %cst_19 : f32 to vector<16x1xf32>
    %29 = arith.maximumf %27, %28 : vector<16x1xf32>
    %30 = vector.broadcast %23 : vector<16x1xf32> to vector<16x128xf32>
    %31 = arith.subf %14, %30 : vector<16x128xf32>
    %cst_20 = arith.constant 9.99999974E-6 : f32
    %32 = vector.broadcast %cst_20 : f32 to vector<16x1xf32>
    %33 = arith.addf %29, %32 : vector<16x1xf32>
    %34 = math.rsqrt %33 : vector<16x1xf32>
    %35 = vector.broadcast %34 : vector<16x1xf32> to vector<16x128xf32>
    %36 = arith.mulf %31, %35 : vector<16x128xf32>
    %37 = vector.broadcast %15 : vector<1x128xf32> to vector<16x128xf32>
    %38 = arith.mulf %36, %37 : vector<16x128xf32>
    %39 = vector.broadcast %16 : vector<1x128xf32> to vector<16x128xf32>
    %40 = arith.addf %38, %39 : vector<16x128xf32>
    %c0_21 = arith.constant 0 : index
    %c0_22 = arith.constant 0 : index
    %41 = vector.load %arg8[%c0_21, %c0_22] : memref<16x128xf32, #tpu.memory_space<vmem>>, vector<16x128xf32>
    tpu.vector_store %arg8[%c0_21, %c0_22], %40 {strides = array<i32>} : memref<16x128xf32, #tpu.memory_space<vmem>>, vector<16x128xf32>,
    return
  }
  func.func @transform_0(%arg0: i32) -> (i32, i32) {
    %c0_i32 = arith.constant 0 : i32
    %c0_i32_0 = arith.constant 0 : i32
    return %arg0, %c0_i32 : i32, i32
  }
  func.func @transform_1(%arg0: i32) -> (i32, i32) {
    %c0_i32 = arith.constant 0 : i32
    %c0_i32_0 = arith.constant 0 : i32
    %c0_i32_1 = arith.constant 0 : i32
    return %c0_i32, %c0_i32_0 : i32, i32
  }
  func.func @transform_2(%arg0: i32) -> (i32, i32) {
    %c0_i32 = arith.constant 0 : i32
    %c0_i32_0 = arith.constant 0 : i32
    %c0_i32_1 = arith.constant 0 : i32
    return %c0_i32, %c0_i32_0 : i32, i32
  }
  func.func @transform_3(%arg0: i32) -> (i32, i32) {
    %c0_i32 = arith.constant 0 : i32
    %c0_i32_0 = arith.constant 0 : i32
    %c0_i32_1 = arith.constant 0 : i32
    return %c0_i32, %c0_i32_0 : i32, i32
  }
  func.func @transform_4(%arg0: i32) -> (i32, i32) {
    %c0_i32 = arith.constant 0 : i32
    %c0_i32_0 = arith.constant 0 : i32
    %c0_i32_1 = arith.constant 0 : i32
    return %c0_i32, %c0_i32_0 : i32, i32
  }
  func.func @transform_5(%arg0: i32) -> (i32, i32) {
    %c0_i32 = arith.constant 0 : i32
    %c0_i32_0 = arith.constant 0 : i32
    %c0_i32_1 = arith.constant 0 : i32
    return %c0_i32, %c0_i32_0 : i32, i32
  }
  func.func @transform_6(%arg0: i32) -> (i32, i32) {
    %c0_i32 = arith.constant 0 : i32
    %c0_i32_0 = arith.constant 0 : i32
    %c0_i32_1 = arith.constant 0 : i32
    return %c0_i32, %c0_i32_0 : i32, i32
  }
  func.func @transform_7(%arg0: i32) -> (i32, i32) {
    %c0_i32 = arith.constant 0 : i32
    %c0_i32_0 = arith.constant 0 : i32
    return %arg0, %c0_i32 : i32, i32
  }
}

</mosaic_0001>

<llo_original>
// kernel: tpu_custom_call.1
$region0: #{tpu_custom_call.1}
  #allocation0 [shape = 'u32[]', space=smem, size = 0x4, offset = 0x4, fixed_abs, tag = 'smem constant byte address 0x4 - core index']
  #allocation1 [shape = 'u32[144,128]{1,0:T(1,128)}', space=vmem, size = 0x12000, scoped, tag = 'internal scratch']
  %s0 = inlined_call_operand.hbm [shape: f32[16,128], index: 0, kind: input, shape index: {}]
  %s1 = inlined_call_operand.hbm [shape: bf16[128,128], index: 1, kind: input, shape index: {}]
  %s2 = inlined_call_operand.vmem [shape: f32[1,128], index: 2, kind: input, shape index: {}]
  %s3 = inlined_call_operand.hbm [shape: bf16[128,128], index: 3, kind: input, shape index: {}]
  %s4 = inlined_call_operand.vmem [shape: f32[1,128], index: 4, kind: input, shape index: {}]
  %s5 = inlined_call_operand.vmem [shape: f32[1,128], index: 5, kind: input, shape index: {}]
  %s6 = inlined_call_operand.vmem [shape: f32[1,128], index: 6, kind: input, shape index: {}]
  %s7 = inlined_call_operand.hbm [shape: f32[16,128], index: 7, kind: output, shape index: {}]
  %s8 = sld [smem:[#allocation0]]
  $region50: #{tpu_custom_call.1} parent=0
    _
  %s10 = ssub.s32 1, %s8
  %s11 = scalar_select 0, %s10, %s8
  $region1: #{tpu_custom_call.1} parent=0
    #allocation2 [shape = 'u8[8192]{0}', space=vmem, size = 0x2000, scoped, tag = 'input window, operand 0, single buffered']
    #allocation3 [shape = 's32[1]{0}', space=sflag, size = 0x4, scoped, tag = 'scoped memory for tpu_custom_call.1']
    #allocation4 [shape = 's32[1]{0}', space=sflag, size = 0x4, scoped, tag = 'scoped memory for tpu_custom_call.1']
    #allocation5 [shape = 'u8[32768]{0}', space=vmem, size = 0x8000, scoped, tag = 'input window, operand 1, single buffered']
    #allocation6 [shape = 's32[1]{0}', space=sflag, size = 0x4, scoped, tag = 'scoped memory for tpu_custom_call.1']
    #allocation7 [shape = 'u8[32768]{0}', space=vmem, size = 0x8000, scoped, tag = 'input window, operand 3, single buffered']
    #allocation8 [shape = 'u8[8192]{0}', space=vmem, size = 0x2000, scoped, tag = 'output window, operand 0, single buffered']
    %12 = vsyncpa [#allocation3], 0
    %13 = vsyncpa [#allocation6], 0
    %14 = vsyncpa [#allocation4], 0
    // Predicated region
    $region2: #{tpu_custom_call.1} parent=1 // pred_check
      _
    $region3: #{tpu_custom_call.1} parent=1 // pred_check_branch
      %16 = sbr.rel (0) target = $region5
    $region4: #{tpu_custom_call.1} parent=1 // pred_region
      %s18 = ssub.s32 256, 256
      %19 = vsyncadd [#allocation3], %s18
      %s20 = sshll.u32 [#allocation2], 4
      %s21 = int_to_ptr.vmem [resolvable:$true] %s20
      %26 = dma.hbm_to_vmem [thread:$0]  %s0, 256, %s21, [#allocation3], 128, 128, 8
    $region5: #{tpu_custom_call.1} parent=1 // pred_fallthru
      _
    // Predicated region
    $region6: #{tpu_custom_call.1} parent=1 // pred_check
      _
    $region7: #{tpu_custom_call.1} parent=1 // pred_check_branch
      %28 = sbr.rel (0) target = $region9
    $region8: #{tpu_custom_call.1} parent=1 // pred_region
      %s30 = ssub.s32 1024, 1024
      %31 = vsyncadd [#allocation6], %s30
      %s32 = sshll.u32 [#allocation5], 4
      %s33 = int_to_ptr.vmem [resolvable:$true] %s32
      %38 = dma.hbm_to_vmem [thread:$0]  %s1, 1024, %s33, [#allocation6], 64, 64, 4
    $region9: #{tpu_custom_call.1} parent=1 // pred_fallthru
      _
    // Predicated region
    $region10: #{tpu_custom_call.1} parent=1 // pred_check
      _
    $region11: #{tpu_custom_call.1} parent=1 // pred_check_branch
      %40 = sbr.rel (0) target = $region13
    $region12: #{tpu_custom_call.1} parent=1 // pred_region
      _
    $region13: #{tpu_custom_call.1} parent=1 // pred_fallthru
      _
    // Predicated region
    $region14: #{tpu_custom_call.1} parent=1 // pred_check
      _
    $region15: #{tpu_custom_call.1} parent=1 // pred_check_branch
      %42 = sbr.rel (0) target = $region17
    $region16: #{tpu_custom_call.1} parent=1 // pred_region
      %s44 = ssub.s32 1024, 1024
      %45 = vsyncadd [#allocation6], %s44
      %s46 = sshll.u32 [#allocation7], 4
      %s47 = int_to_ptr.vmem [resolvable:$true] %s46
      %52 = dma.hbm_to_vmem [thread:$0]  %s3, 1024, %s47, [#allocation6], 64, 64, 4
    $region17: #{tpu_custom_call.1} parent=1 // pred_fallthru
      _
    // Predicated region
    $region18: #{tpu_custom_call.1} parent=1 // pred_check
      _
    $region19: #{tpu_custom_call.1} parent=1 // pred_check_branch
      %54 = sbr.rel (0) target = $region21
    $region20: #{tpu_custom_call.1} parent=1 // pred_region
      _
    $region21: #{tpu_custom_call.1} parent=1 // pred_fallthru
      _
    // Predicated region
    $region22: #{tpu_custom_call.1} parent=1 // pred_check
      _
    $region23: #{tpu_custom_call.1} parent=1 // pred_check_branch
      %56 = sbr.rel (0) target = $region25
    $region24: #{tpu_custom_call.1} parent=1 // pred_region
      _
    $region25: #{tpu_custom_call.1} parent=1 // pred_fallthru
      _
    // Predicated region
    $region26: #{tpu_custom_call.1} parent=1 // pred_check
      _
    $region27: #{tpu_custom_call.1} parent=1 // pred_check_branch
      %58 = sbr.rel (0) target = $region29
    $region28: #{tpu_custom_call.1} parent=1 // pred_region
      _
    $region29: #{tpu_custom_call.1} parent=1 // pred_fallthru
      _
    // Predicated region
    $region30: #{tpu_custom_call.1} parent=1 // pred_check
      _
    $region31: #{tpu_custom_call.1} parent=1 // pred_check_branch
      %60 = sbr.rel (0) target = $region33
    $region32: #{tpu_custom_call.1} parent=1 // pred_region
      %61 = dma.done [#allocation3], 256
    $region33: #{tpu_custom_call.1} parent=1 // pred_fallthru
      _
    // Predicated region
    $region34: #{tpu_custom_call.1} parent=1 // pred_check
      _
    $region35: #{tpu_custom_call.1} parent=1 // pred_check_branch
      %63 = sbr.rel (0) target = $region37
    $region36: #{tpu_custom_call.1} parent=1 // pred_region
      %64 = dma.done [#allocation6], 1024
    $region37: #{tpu_custom_call.1} parent=1 // pred_fallthru
      _
    // Predicated region
    $region38: #{tpu_custom_call.1} parent=1 // pred_check
      _
    $region39: #{tpu_custom_call.1} parent=1 // pred_check_branch
      %66 = sbr.rel (0) target = $region41
    $region40: #{tpu_custom_call.1} parent=1 // pred_region
      %67 = dma.done [#allocation6], 1024
    $region41: #{tpu_custom_call.1} parent=1 // pred_fallthru
      _
    %v69 = vld [vmem:[#allocation2] sm:$0xff]
    %v70 = vld [vmem:[#allocation2 + $0x8] sm:$0xff]
    %v71 = vpack.c.bf16 %v70, %v69
    %v72 = vld [vmem:[#allocation5] sm:$0xf]
    %v73 = vld [vmem:[#allocation5 + $0x4] sm:$0xf]
    %v74 = vld [vmem:[#allocation5 + $0x8] sm:$0xf]
    %v75 = vld [vmem:[#allocation5 + $0xc] sm:$0xf]
    %v76 = vld [vmem:[#allocation5 + $0x10] sm:$0xf]
    %v77 = vld [vmem:[#allocation5 + $0x14] sm:$0xf]
    %v78 = vld [vmem:[#allocation5 + $0x18] sm:$0xf]
    %v79 = vld [vmem:[#allocation5 + $0x1c] sm:$0xf]
    %v80 = vld [vmem:[#allocation5 + $0x20] sm:$0xf]
    %v81 = vld [vmem:[#allocation5 + $0x24] sm:$0xf]
    %v82 = vld [vmem:[#allocation5 + $0x28] sm:$0xf]
    %v83 = vld [vmem:[#allocation5 + $0x2c] sm:$0xf]
    %v84 = vld [vmem:[#allocation5 + $0x30] sm:$0xf]
    %v85 = vld [vmem:[#allocation5 + $0x34] sm:$0xf]
    %v86 = vld [vmem:[#allocation5 + $0x38] sm:$0xf]
    %v87 = vld [vmem:[#allocation5 + $0x3c] sm:$0xf]
    %v88 = vld [vmem:[%s2] sm:$0x1]
    %v90 = vlaneseq
    %v91 = vshrl.u32 %v90, 7
    %v92 = vsub.s32 0, %v91
    %v93 = vrot.slane %v88, %v92
    %v111 = vunpack.c.l.b16 %v72
    %v112 = vunpack.c.l.b16 %v73
    %v113 = vunpack.c.l.b16 %v74
    %v114 = vunpack.c.l.b16 %v75
    %v115 = vunpack.c.l.b16 %v76
    %v116 = vunpack.c.l.b16 %v77
    %v117 = vunpack.c.l.b16 %v78
    %v118 = vunpack.c.l.b16 %v79
    %v119 = vunpack.c.l.b16 %v80
    %v120 = vunpack.c.l.b16 %v81
    %v121 = vunpack.c.l.b16 %v82
    %v122 = vunpack.c.l.b16 %v83
    %v123 = vunpack.c.l.b16 %v84
    %v124 = vunpack.c.l.b16 %v85
    %v125 = vunpack.c.l.b16 %v86
    %v126 = vunpack.c.l.b16 %v87
    %v127 = vpack.c.b16 %v112, %v111
    %v128 = vpack.c.b16 %v114, %v113
    %v129 = vpack.c.b16 %v116, %v115
    %v130 = vpack.c.b16 %v118, %v117
    %v131 = vpack.c.b16 %v120, %v119
    %v132 = vpack.c.b16 %v122, %v121
    %v133 = vpack.c.b16 %v124, %v123
    %v134 = vpack.c.b16 %v126, %v125
    %143 = vmatprep.subr.bf16.mxu0 0
    %144 = vmatpush1.bf16.msra.mxu0 %v134
    %145 = vmatprep.subr.bf16.mxu0 0
    %146 = vmatpush1.bf16.msra.mxu0 %v133
    %147 = vmatprep.subr.bf16.mxu0 0
    %148 = vmatpush1.bf16.msra.mxu0 %v132
    %149 = vmatprep.subr.bf16.mxu0 0
    %150 = vmatpush1.bf16.msra.mxu0 %v131
    %151 = vmatprep.subr.bf16.mxu0 0
    %152 = vmatpush1.bf16.msra.mxu0 %v130
    %153 = vmatprep.subr.bf16.mxu0 0
    %154 = vmatpush1.bf16.msra.mxu0 %v129
    %155 = vmatprep.subr.bf16.mxu0 0
    %156 = vmatpush1.bf16.msra.mxu0 %v128
    %157 = vmatprep.subr.bf16.mxu0 0
    %158 = vmatpush1.bf16.msra.mxu0 %v127
    %159 = vmatprep.subr.bf16.mxu0 0
    %160 = vmatpush2.bf16.msra.mxu0 0
    %161 = vmatprep.subr.bf16.mxu0 0
    %162 = vmatpush2.bf16.msra.mxu0 0
    %163 = vmatprep.subr.bf16.mxu0 0
    %164 = vmatpush2.bf16.msra.mxu0 0
    %165 = vmatprep.subr.bf16.mxu0 0
    %166 = vmatpush2.bf16.msra.mxu0 0
    %167 = vmatprep.subr.bf16.mxu0 0
    %168 = vmatpush2.bf16.msra.mxu0 0
    %169 = vmatprep.subr.bf16.mxu0 0
    %170 = vmatpush2.bf16.msra.mxu0 0
    %171 = vmatprep.subr.bf16.mxu0 0
    %172 = vmatpush2.bf16.msra.mxu0 0
    %173 = vmatprep.subr.bf16.mxu0 0
    %174 = vmatpush2.bf16.msra.mxu0 0
    %175 = vmatprep.mubr.bf16.mxu0 0
    %176 = vmatmul.mubr.bf16.gmra.mxu0 %v71
    %v177 = vpop.f32.mrf.mxu0
    %v178 = vadd.f32 %v93, %v177
    %v179 = vpop.f32.mrf.mxu0
    %v180 = vpop.f32.mrf.mxu0
    %v181 = vadd.f32 %v93, %v180
    %v182 = vpop.f32.mrf.mxu0
    %183 = vdwg.mxu0
    %v184 = vmax.f32 %v178, 0.0
    %v185 = vmax.f32 %v181, 0.0
    %v186 = vpack.c.bf16 %v185, %v184
    %v187 = vld [vmem:[#allocation7] sm:$0xf]
    %v188 = vld [vmem:[#allocation7 + $0x4] sm:$0xf]
    %v189 = vld [vmem:[#allocation7 + $0x8] sm:$0xf]
    %v190 = vld [vmem:[#allocation7 + $0xc] sm:$0xf]
    %v191 = vld [vmem:[#allocation7 + $0x10] sm:$0xf]
    %v192 = vld [vmem:[#allocation7 + $0x14] sm:$0xf]
    %v193 = vld [vmem:[#allocation7 + $0x18] sm:$0xf]
    %v194 = vld [vmem:[#allocation7 + $0x1c] sm:$0xf]
    %v195 = vld [vmem:[#allocation7 + $0x20] sm:$0xf]
    %v196 = vld [vmem:[#allocation7 + $0x24] sm:$0xf]
    %v197 = vld [vmem:[#allocation7 + $0x28] sm:$0xf]
    %v198 = vld [vmem:[#allocation7 + $0x2c] sm:$0xf]
    %v199 = vld [vmem:[#allocation7 + $0x30] sm:$0xf]
    %v200 = vld [vmem:[#allocation7 + $0x34] sm:$0xf]
    %v201 = vld [vmem:[#allocation7 + $0x38] sm:$0xf]
    %v202 = vld [vmem:[#allocation7 + $0x3c] sm:$0xf]
    %v203 = vld [vmem:[%s4] sm:$0x1]
    %v205 = vlaneseq
    %v206 = vshrl.u32 %v205, 7
    %v207 = vsub.s32 0, %v206
    %v208 = vrot.slane %v203, %v207
    %v226 = vunpack.c.l.b16 %v187
    %v227 = vunpack.c.l.b16 %v188
    %v228 = vunpack.c.l.b16 %v189
    %v229 = vunpack.c.l.b16 %v190
    %v230 = vunpack.c.l.b16 %v191
    %v231 = vunpack.c.l.b16 %v192
    %v232 = vunpack.c.l.b16 %v193
    %v233 = vunpack.c.l.b16 %v194
    %v234 = vunpack.c.l.b16 %v195
    %v235 = vunpack.c.l.b16 %v196
    %v236 = vunpack.c.l.b16 %v197
    %v237 = vunpack.c.l.b16 %v198
    %v238 = vunpack.c.l.b16 %v199
    %v239 = vunpack.c.l.b16 %v200
    %v240 = vunpack.c.l.b16 %v201
    %v241 = vunpack.c.l.b16 %v202
    %v242 = vpack.c.b16 %v227, %v226
    %v243 = vpack.c.b16 %v229, %v228
    %v244 = vpack.c.b16 %v231, %v230
    %v245 = vpack.c.b16 %v233, %v232
    %v246 = vpack.c.b16 %v235, %v234
    %v247 = vpack.c.b16 %v237, %v236
    %v248 = vpack.c.b16 %v239, %v238
    %v249 = vpack.c.b16 %v241, %v240
    %258 = vmatprep.subr.bf16.mxu0 0
    %259 = vmatpush1.bf16.msra.mxu0 %v249
    %260 = vmatprep.subr.bf16.mxu0 0
    %261 = vmatpush1.bf16.msra.mxu0 %v248
    %262 = vmatprep.subr.bf16.mxu0 0
    %263 = vmatpush1.bf16.msra.mxu0 %v247
    %264 = vmatprep.subr.bf16.mxu0 0
    %265 = vmatpush1.bf16.msra.mxu0 %v246
    %266 = vmatprep.subr.bf16.mxu0 0
    %267 = vmatpush1.bf16.msra.mxu0 %v245
    %268 = vmatprep.subr.bf16.mxu0 0
    %269 = vmatpush1.bf16.msra.mxu0 %v244
    %270 = vmatprep.subr.bf16.mxu0 0
    %271 = vmatpush1.bf16.msra.mxu0 %v243
    %272 = vmatprep.subr.bf16.mxu0 0
    %273 = vmatpush1.bf16.msra.mxu0 %v242
    %274 = vmatprep.subr.bf16.mxu0 0
    %275 = vmatpush2.bf16.msra.mxu0 0
    %276 = vmatprep.subr.bf16.mxu0 0
    %277 = vmatpush2.bf16.msra.mxu0 0
    %278 = vmatprep.subr.bf16.mxu0 0
    %279 = vmatpush2.bf16.msra.mxu0 0
    %280 = vmatprep.subr.bf16.mxu0 0
    %281 = vmatpush2.bf16.msra.mxu0 0
    %282 = vmatprep.subr.bf16.mxu0 0
    %283 = vmatpush2.bf16.msra.mxu0 0
    %284 = vmatprep.subr.bf16.mxu0 0
    %285 = vmatpush2.bf16.msra.mxu0 0
    %286 = vmatprep.subr.bf16.mxu0 0
    %287 = vmatpush2.bf16.msra.mxu0 0
    %288 = vmatprep.subr.bf16.mxu0 0
    %289 = vmatpush2.bf16.msra.mxu0 0
    %290 = vmatprep.mubr.bf16.mxu0 0
    %291 = vmatmul.mubr.bf16.gmra.mxu0 %v186
    %v292 = vpop.f32.mrf.mxu0
    %v293 = vadd.f32 %v208, %v292
    %v294 = vpop.f32.mrf.mxu0
    %v295 = vpop.f32.mrf.mxu0
    %v296 = vadd.f32 %v208, %v295
    %v297 = vpop.f32.mrf.mxu0
    %298 = vdwg.mxu0
    %v299 = vld [vmem:[%s5] sm:$0x1]
    %v300 = vld [vmem:[%s6] sm:$0x1]
    %301 = vadd.xlane.f32.xlu0 %v293
    %v302 = vpop.xlane.xlu0 %301
    %303 = vadd.xlane.f32.xlu0 %v296
    %v304 = vpop.xlane.xlu0 %303
    %v305 = vmul.f32 %v293, %v293
    %v306 = vmul.f32 %v296, %v296
    %307 = vadd.xlane.f32.xlu0 %v305
    %v308 = vpop.xlane.xlu0 %307
    %309 = vadd.xlane.f32.xlu0 %v306
    %v310 = vpop.xlane.xlu0 %309
    %v311 = vmul.f32 %v302, 0.0625
    %v312 = vmul.f32 %v304, 0.0625
    %v313 = vmul.f32 %v308, 0.0625
    %v314 = vmul.f32 %v310, 0.0625
    %v315 = vmul.f32 %v311, %v311
    %v316 = vmul.f32 %v312, %v312
    %v317 = vsub.f32 %v313, %v315
    %v318 = vsub.f32 %v314, %v316
    %v319 = vmax.f32 %v317, 0.0
    %v320 = vmax.f32 %v318, 0.0
    %v321 = vsub.f32 %v293, %v311
    %v322 = vsub.f32 %v296, %v312
    %v323 = vadd.f32 %v319, 1e-05
    %v324 = vadd.f32 %v320, 1e-05
    %v325 = vrsqrt.pop %v323
    %v326 = vrsqrt.pop %v324
    %v327 = vmul.f32 %v321, %v325
    %v328 = vmul.f32 %v322, %v326
    %v330 = vlaneseq
    %v331 = vshrl.u32 %v330, 7
    %v332 = vsub.s32 0, %v331
    %v333 = vrot.slane %v299, %v332
    %v335 = vmul.f32 %v327, %v333
    %v336 = vmul.f32 %v328, %v333
    %v338 = vlaneseq
    %v339 = vshrl.u32 %v338, 7
    %v340 = vsub.s32 0, %v339
    %v341 = vrot.slane %v300, %v340
    %v343 = vadd.f32 %v335, %v341
    %v344 = vadd.f32 %v336, %v341
    %345 = vst [vmem:[#allocation8] sm:$0xff] %v343
    %346 = vst [vmem:[#allocation8 + $0x8] sm:$0xff] %v344
    // Predicated region
    $region42: #{tpu_custom_call.1} parent=1 // pred_check
      _
    $region43: #{tpu_custom_call.1} parent=1 // pred_check_branch
      %348 = sbr.rel (0) target = $region45
    $region44: #{tpu_custom_call.1} parent=1 // pred_region
      %s350 = ssub.s32 256, 256
      %351 = vsyncadd [#allocation4], %s350
      %s352 = sshll.u32 [#allocation8], 4
      %s353 = int_to_ptr.vmem [resolvable:$true] %s352
      %358 = dma.vmem_to_hbm [thread:$0]  %s353, 256, %s7, [#allocation4], 128, 128, 8
    $region45: #{tpu_custom_call.1} parent=1 // pred_fallthru
      _
    // Predicated region
    $region46: #{tpu_custom_call.1} parent=1 // pred_check
      _
    $region47: #{tpu_custom_call.1} parent=1 // pred_check_branch
      %360 = sbr.rel (0) target = $region49
    $region48: #{tpu_custom_call.1} parent=1 // pred_region
      %361 = dma.done [#allocation4], 256
    $region49: #{tpu_custom_call.1} parent=1 // pred_fallthru
      _
    %362 = vsyncpa [#allocation3], 1
    %363 = vsyncpa [#allocation6], 1
    %364 = vsyncpa [#allocation4], 1

</llo_original>
